<compile_context>
chip_gen: v6e
topology: v6e:2x2x1
jax: 0.10.0
libtpu: 0.0.40
codegen_flags: <defaults>
</compile_context>

<pallas_src>
import math

import jax
import jax.numpy as jnp
from jax.experimental import pallas as pl
from jax.experimental.pallas import tpu as pltpu


def _round_up(x: int, m: int) -> int:
    return (x + m - 1) // m * m


def _aspect_ratio_embed_kernel(ids_ref, gate_ref, emb_ref, hs_ref, out_ref):
    # ids_ref : SMEM [B] int32           (aspect ratio id per batch element)
    # gate_ref: SMEM [1] float32         (tanh(gate), pre-computed in the wrapper)
    # emb_ref : VMEM [R, T, Hf] float32  (lane-folded table, resident across grid)
    # hs_ref  : VMEM [1, T, TP, Hf]      (one patch tile of hidden_state)
    # out_ref : VMEM [1, T, TP, Hf]
    b = pl.program_id(0)
    rid = ids_ref[b]                         # dynamic scalar index from SMEM
    g = gate_ref[0]
    emb = emb_ref[rid] * g                   # (T, Hf): scale the SMALL row only
    out_ref[...] = (hs_ref[...] + emb[None, :, None, :]).astype(out_ref.dtype)


def aspect_ratio_embedding_forward(
    hidden_state,            # [B, T, P, H]
    aspect_ratio_ids,        # [B] int
    embedding_table,         # [num_ratios, T*H]
    gate,                    # scalar
    *,
    target_block_bytes: int = 4 * 1024 * 1024,   # ~4 MiB per streamed block
):
    B, T, P, H = hidden_state.shape
    R = embedding_table.shape[0]
    out_dtype = hidden_state.dtype
    itemsize = hidden_state.dtype.itemsize

    # --- lane folding: make the last (lane) dim a multiple of 128 -------------
    f = 128 // math.gcd(H, 128)          # consecutive patches folded into lanes
    Hf = H * f                           # folded lane width (multiple of 128)
    P_f = _round_up(P, f)
    Pp = P_f // f                        # rows along the folded patch axis

    # --- pick the patch-tile size (multiple of 8, ~target_block_bytes) --------
    row_bytes = T * Hf * itemsize
    tp_cap = max(1, target_block_bytes // row_bytes)
    if tp_cap >= Pp:
        tp, grid_p = Pp, 1               # whole (folded) patch axis in one block
    else:
        nblk = -(-Pp // tp_cap)
        tp = _round_up(-(-Pp // nblk), 8)
        grid_p = -(-Pp // tp)
        if grid_p == 1:
            tp = Pp
    Pp_pad = tp * grid_p
    P_total = Pp_pad * f

    # --- glue: pad (if needed) and fold the (P, H) tail ------------------------
    hs = hidden_state
    if P_total != P:
        hs = jnp.pad(hs, ((0, 0), (0, 0), (0, P_total - P), (0, 0)))
    hs = hs.reshape(B, T, Pp_pad, Hf)

    emb3 = embedding_table.reshape(R, T, H).astype(jnp.float32)
    if f > 1:
        # Repeat each embedding row f times along the folded lane axis so it lines
        # up with the folded hidden_state layout (pure layout plumbing, tiny array).
        emb_fold = jnp.broadcast_to(emb3[:, :, None, :], (R, T, f, H)).reshape(R, T, Hf)
    else:
        emb_fold = emb3

    g = jnp.tanh(jnp.asarray(gate, jnp.float32)).reshape(1)   # hoisted tanh(gate)
    ids = aspect_ratio_ids.astype(jnp.int32)

    hs_spec = pl.BlockSpec((1, T, tp, Hf), lambda b, j: (b, 0, j, 0))

    # VMEM budget: double-buffered in + out tiles plus the resident table (+25% slack).
    block_bytes = T * tp * Hf * itemsize
    table_bytes = R * T * Hf * 4
    vmem_need = 4 * block_bytes + 2 * table_bytes
    vmem_limit = min(int(vmem_need * 1.25) + (4 << 20), 60 << 20)

    n_elems = B * T * Pp_pad * Hf
    cost = pl.CostEstimate(
        flops=2 * n_elems,
        transcendentals=0,
        bytes_accessed=2 * n_elems * itemsize + table_bytes + B * 4 + 4,
    )

    out = pl.pallas_call(
        _aspect_ratio_embed_kernel,
        out_shape=jax.ShapeDtypeStruct((B, T, Pp_pad, Hf), out_dtype),
        grid=(B, grid_p),
        in_specs=[
            pl.BlockSpec(memory_space=pltpu.MemorySpace.SMEM),        # ids
            pl.BlockSpec(memory_space=pltpu.MemorySpace.SMEM),        # tanh(gate)
            pl.BlockSpec((R, T, Hf), lambda b, j: (0, 0, 0)),         # resident table
            hs_spec,                                                  # hidden_state tile
        ],
        out_specs=hs_spec,
        # Alias hidden_state (input index 3) onto output 0: no second HBM slab
        # when the caller donates the buffer.
        input_output_aliases={3: 0},
        compiler_params=pltpu.CompilerParams(
            dimension_semantics=("parallel", "parallel"),
            vmem_limit_bytes=vmem_limit,
        ),
        cost_estimate=cost,
    )(ids, g, emb_fold, hs)

    out = out.reshape(B, T, P_total, H)
    if P_total != P:
        out = out[:, :, :P, :]
    return out


if __name__ == "__main__":
    # Small config consistent with the module:
    #   max_num_tiles=4, hidden_size=32, max_aspect_ratio_id=5, num_patches=8, batch=2
    B, T, P, H = 2, 4, 8, 32
    max_aspect_ratio_id = 5
    num_ratios = max_aspect_ratio_id + 1

    key = jax.random.PRNGKey(0)
    k1, k2 = jax.random.split(key, 2)

    hidden_state = jax.random.normal(k1, (B, T, P, H), dtype=jnp.float32)
    embedding_table = jax.random.normal(k2, (num_ratios, T * H), dtype=jnp.float32) * 0.02
    gate = jnp.float32(0.5)
    aspect_ratio_ids = jnp.array([1, 3], dtype=jnp.int32)

    out = aspect_ratio_embedding_forward(hidden_state, aspect_ratio_ids, embedding_table, gate)
    out = jax.block_until_ready(out)

    # Pure-JAX reference (same math as the PyTorch forward).
    emb_ref = embedding_table[aspect_ratio_ids].reshape(B, T, 1, H) * jnp.tanh(gate)
    ref = hidden_state + emb_ref
    assert jnp.allclose(out, ref, atol=1e-6, rtol=1e-6), "mismatch vs reference"

    print("KERNEL_OK")
</pallas_src>

<mosaic_0001>
module attributes {stable_mosaic.version = 11 : i64} {
  func.func @_aspect_ratio_embed_kernel(%arg0: i32, %arg1: i32, %arg2: memref<2xi32, #tpu.memory_space<smem>>, %arg3: memref<1xf32, #tpu.memory_space<smem>>, %arg4: memref<6x4x128xf32, #tpu.memory_space<vmem>>, %arg5: memref<1x4x2x128xf32, #tpu.memory_space<vmem>>, %arg6: memref<1x4x2x128xf32, #tpu.memory_space<vmem>>) attributes {dimension_semantics = [#tpu.dimension_semantics<parallel>, #tpu.dimension_semantics<parallel>], iteration_bounds = array<i64: 2, 1>, scalar_prefetch = 0 : i64, scratch_operands = 0 : i64, tpu.core_type = #tpu.core_type<tc>, window_params = [{transform_indices = @transform_0, window_bounds = array<i64: 2>}, {transform_indices = @transform_1, window_bounds = array<i64: 1>}, {pipeline_mode = #tpu.pipeline_mode<synchronous>, transform_indices = @transform_2, window_bounds = array<i64: 6, 4, 128>}, {transform_indices = @transform_3, window_bounds = array<i64: 1, 4, 2, 128>}, {transform_indices = @transform_4, window_bounds = array<i64: 1, 4, 2, 128>}]} {
    %0 = arith.index_cast %arg0 : i32 to index
    %1 = memref.load %arg2[%0] : memref<2xi32, #tpu.memory_space<smem>>
    %c0 = arith.constant 0 : index
    %2 = memref.load %arg3[%c0] : memref<1xf32, #tpu.memory_space<smem>>
    %3 = arith.index_cast %1 : i32 to index
    %c0_0 = arith.constant 0 : index
    %c0_1 = arith.constant 0 : index
    %4 = vector.load %arg4[%3, %c0_0, %c0_1] : memref<6x4x128xf32, #tpu.memory_space<vmem>>, vector<1x4x128xf32>
    %5 = vector.shape_cast %4 : vector<1x4x128xf32> to vector<4x128xf32>
    %6 = vector.broadcast %2 : f32 to vector<4x128xf32>
    %7 = arith.mulf %5, %6 : vector<4x128xf32>
    %c0_2 = arith.constant 0 : index
    %c0_3 = arith.constant 0 : index
    %c0_4 = arith.constant 0 : index
    %c0_5 = arith.constant 0 : index
    %8 = vector.load %arg5[%c0_2, %c0_3, %c0_4, %c0_5] : memref<1x4x2x128xf32, #tpu.memory_space<vmem>>, vector<1x4x2x128xf32>
    %9 = vector.shape_cast %7 : vector<4x128xf32> to vector<1x4x1x128xf32>
    %10 = vector.broadcast %9 : vector<1x4x1x128xf32> to vector<1x4x2x128xf32>
    %11 = arith.addf %8, %10 : vector<1x4x2x128xf32>
    %c0_6 = arith.constant 0 : index
    %c0_7 = arith.constant 0 : index
    %c0_8 = arith.constant 0 : index
    %c0_9 = arith.constant 0 : index
    %12 = vector.load %arg6[%c0_6, %c0_7, %c0_8, %c0_9] : memref<1x4x2x128xf32, #tpu.memory_space<vmem>>, vector<1x4x2x128xf32>
    tpu.vector_store %arg6[%c0_6, %c0_7, %c0_8, %c0_9], %11 {strides = array<i32>} : memref<1x4x2x128xf32, #tpu.memory_space<vmem>>, vector<1x4x2x128xf32>,
    return
  }
  func.func @transform_0(%arg0: i32, %arg1: i32) -> i32 {
    %c0_i32 = arith.constant 0 : i32
    %c0_i32_0 = arith.constant 0 : i32
    return %c0_i32 : i32
  }
  func.func @transform_1(%arg0: i32, %arg1: i32) -> i32 {
    %c0_i32 = arith.constant 0 : i32
    %c0_i32_0 = arith.constant 0 : i32
    return %c0_i32 : i32
  }
  func.func @transform_2(%arg0: i32, %arg1: i32) -> (i32, i32, i32) {
    %c0_i32 = arith.constant 0 : i32
    %c0_i32_0 = arith.constant 0 : i32
    %c0_i32_1 = arith.constant 0 : i32
    %c0_i32_2 = arith.constant 0 : i32
    return %c0_i32, %c0_i32_0, %c0_i32_1 : i32, i32, i32
  }
  func.func @transform_3(%arg0: i32, %arg1: i32) -> (i32, i32, i32, i32) {
    %c0_i32 = arith.constant 0 : i32
    %c0_i32_0 = arith.constant 0 : i32
    %c0_i32_1 = arith.constant 0 : i32
    return %arg0, %c0_i32, %arg1, %c0_i32_0 : i32, i32, i32, i32
  }
  func.func @transform_4(%arg0: i32, %arg1: i32) -> (i32, i32, i32, i32) {
    %c0_i32 = arith.constant 0 : i32
    %c0_i32_0 = arith.constant 0 : i32
    %c0_i32_1 = arith.constant 0 : i32
    return %arg0, %c0_i32, %arg1, %c0_i32_0 : i32, i32, i32, i32
  }
}

</mosaic_0001>

<llo_original>
// kernel: tpu_custom_call.1
$region0: #{tpu_custom_call.1}
  #allocation0 [shape = 'u32[]', space=smem, size = 0x4, offset = 0x4, fixed_abs, tag = 'smem constant byte address 0x4 - core index']
  #allocation1 [shape = 'u32[144,128]{1,0:T(1,128)}', space=vmem, size = 0x12000, scoped, tag = 'internal scratch']
  #allocation2 [shape = 'f32[1]{0:T(128)S(6)}', space=smem, size = 0x200, scoped, tag = 'scoped memory for tpu_custom_call.1']
  %s0 = inlined_call_operand.vmem [shape: s32[2], index: 0, kind: input, shape index: {}]
  %s1 = inlined_call_operand.<no memory space> [shape: f32[1], index: 1, kind: input, shape index: {}]
  %s2 = inlined_call_operand.vmem [shape: f32[6,4,128], index: 2, kind: input, shape index: {}]
  %s3 = inlined_call_operand.hbm [shape: f32[2,4,2,128], index: 3, kind: input, shape index: {}, may-alias: {3,4}]
  %s4 = inlined_call_operand.hbm [shape: f32[2,4,2,128], index: 4, kind: output, shape index: {}, may-alias: {3,4}]
  %s5 = sld [smem:[#allocation0]]
  $region57: #{tpu_custom_call.1} parent=0
    _
  %s7 = ssub.s32 1, %s5
  %s8 = scalar_select 0, %s7, %s5
  %9 = sst [smem:[#allocation2]] %s1
  $region1: #{tpu_custom_call.1} parent=0
    #allocation3 [shape = 'u8[512]{0}', space=smem, size = 0x200, scoped, tag = 'input window, operand 0, single buffered']
    #allocation4 [shape = 's32[2]{0}', space=sflag, size = 0x8, scoped, tag = 'scoped memory for tpu_custom_call.1']
    #allocation5 [shape = 's32[2]{0}', space=sflag, size = 0x8, scoped, tag = 'scoped memory for tpu_custom_call.1']
    #allocation6 [shape = 's32[2]{0}', space=sflag, size = 0x8, scoped, tag = 'scoped memory for tpu_custom_call.1']
    #allocation7 [shape = 'u8[8192]{0}', space=vmem, size = 0x2000, scoped, tag = 'input window, operand 3']
    #allocation8 [shape = 'u8[8192]{0}', space=vmem, size = 0x2000, scoped, tag = 'output window, operand 0']
    %10 = vsyncpa [#allocation6], 0
    %11 = vsyncpa [#allocation4], 0
    %s12 = scalar_lea.sflag [#allocation4], 1
    %13 = vsyncpa %s12, 0
    %14 = vsyncpa [#allocation5], 0
    %s15 = scalar_lea.sflag [#allocation5], 1
    %16 = vsyncpa %s15, 0
    loop: start=0, step=1, limit=4
    $region2: #{tpu_custom_call.1} parent=1 // loop_pre_header
      _
    $region3: #{tpu_custom_call.1} parent=1 // loop_header
      %s18 = sphi 0, %s22
      %p19 = scmp.ge.s32.totalorder %s18, 4
      %s25 = sphi 0, %s37
      %s26 = sphi 0, %s33
      %s27 = sphi 0, %s25
      %s28 = sphi 0, %s26
      %s29 = sphi 0, %s27
      %s30 = sphi 0, %s28
      %s38 = sphi 0, %s38
      %s40 = sphi 0, %s38
      %s41 = sphi 0, %s40
      %s55 = sphi 0, %s41
      %s59 = sphi 0, %s59
      %s61 = sphi 0, %s59
      %s62 = sphi 0, %s61
      %s76 = sphi 0, %s62
      %s80 = sphi 0, %s80
      %s82 = sphi 0, %s80
      %s83 = sphi 0, %s82
      %s97 = sphi 0, %s83
      %s105 = sphi 0, %s107
      %s108 = sphi 0, %s105
      %s109 = sphi 0, %s108
      %s125 = sphi 0, %s109
      %s133 = sphi 0, %s135
      %s136 = sphi 0, %s133
      %s137 = sphi 0, %s136
      %s153 = sphi 0, %s137
    $region4: #{tpu_custom_call.1} parent=1 // loop_header_branch
      %21 = sbr.rel (%p19) target = $region8
    $region5: #{tpu_custom_call.1} parent=1 // loop_body
      %s23 = ssub.s32 %s18, 1
      %s24 = ssub.s32 %s18, 2
      %s31 = sadd.s32 1, %s26
      %p32 = scmp.ge.s32.totalorder %s31, 1
      %s33 = scalar_select %p32, 0, %s31
      %s34 = sadd.s32 1, %s25
      %s35 = scalar_select %p32, %s34, %s25
      %p36 = scmp.ge.s32.totalorder %s35, 2
      %s37 = scalar_select %p36, 0, %s35
      %s39 = sadd.s32 %s38, 1
      %p42 = scmp.eq.s32.totalorder %s18, 1
      %p43 = scmp.ne.s32.totalorder %s38, %s40
      %p44 = scmp.eq.s32.totalorder %s18, 0
      %p45 = por %p43, %p44
      %p46 = scmp.ne.s32.totalorder %s38, %s40
      %p47 = scmp.eq.s32.totalorder %s23, 1
      %p48 = por %p46, %p47
      %p49 = scmp.ne.s32.totalorder %s40, %s41
      %p50 = scmp.eq.s32.totalorder %s23, 0
      %p51 = por %p49, %p50
      %p52 = scmp.ne.s32.totalorder %s40, %s41
      %p53 = scmp.eq.s32.totalorder %s24, 1
      %p54 = por %p52, %p53
      %p56 = scmp.ne.s32.totalorder %s41, %s55
      %p57 = scmp.eq.s32.totalorder %s24, 0
      %p58 = por %p56, %p57
      %s60 = sadd.s32 %s59, 1
      %p63 = scmp.eq.s32.totalorder %s18, 1
      %p64 = scmp.ne.s32.totalorder %s59, %s61
      %p65 = scmp.eq.s32.totalorder %s18, 0
      %p66 = por %p64, %p65
      %p67 = scmp.ne.s32.totalorder %s59, %s61
      %p68 = scmp.eq.s32.totalorder %s23, 1
      %p69 = por %p67, %p68
      %p70 = scmp.ne.s32.totalorder %s61, %s62
      %p71 = scmp.eq.s32.totalorder %s23, 0
      %p72 = por %p70, %p71
      %p73 = scmp.ne.s32.totalorder %s61, %s62
      %p74 = scmp.eq.s32.totalorder %s24, 1
      %p75 = por %p73, %p74
      %p77 = scmp.ne.s32.totalorder %s62, %s76
      %p78 = scmp.eq.s32.totalorder %s24, 0
      %p79 = por %p77, %p78
      %s81 = sadd.s32 %s80, 1
      %p84 = scmp.eq.s32.totalorder %s18, 1
      %p85 = scmp.ne.s32.totalorder %s80, %s82
      %p86 = scmp.eq.s32.totalorder %s18, 0
      %p87 = por %p85, %p86
      %p88 = scmp.ne.s32.totalorder %s80, %s82
      %p89 = scmp.eq.s32.totalorder %s23, 1
      %p90 = por %p88, %p89
      %p91 = scmp.ne.s32.totalorder %s82, %s83
      %p92 = scmp.eq.s32.totalorder %s23, 0
      %p93 = por %p91, %p92
      %p94 = scmp.ne.s32.totalorder %s82, %s83
      %p95 = scmp.eq.s32.totalorder %s24, 1
      %p96 = por %p94, %p95
      %p98 = scmp.ne.s32.totalorder %s83, %s97
      %p99 = scmp.eq.s32.totalorder %s24, 0
      %p100 = por %p98, %p99
      %s101 = ssub.s32 %s25, %s37
      %s102 = ssub.s32 %s26, %s33
      %s103 = sor.u32 %s101, %s102
      %p104 = scmp.eq.s32.totalorder %s103, 0
      %s106 = sadd.s32 %s105, 1
      %s107 = scalar_select %p104, %s105, %s106
      %p110 = pneg %p104
      %p111 = scmp.eq.s32.totalorder %s18, 1
      %p112 = por %p110, %p111
      %p113 = scmp.ne.s32.totalorder %s105, %s108
      %p114 = scmp.eq.s32.totalorder %s18, 0
      %p115 = por %p113, %p114
      %p116 = scmp.ne.s32.totalorder %s105, %s108
      %p117 = scmp.eq.s32.totalorder %s23, 1
      %p118 = por %p116, %p117
      %p119 = scmp.ne.s32.totalorder %s108, %s109
      %p120 = scmp.eq.s32.totalorder %s23, 0
      %p121 = por %p119, %p120
      %p122 = scmp.ne.s32.totalorder %s108, %s109
      %p123 = scmp.eq.s32.totalorder %s24, 1
      %p124 = por %p122, %p123
      %p126 = scmp.ne.s32.totalorder %s109, %s125
      %p127 = scmp.eq.s32.totalorder %s24, 0
      %p128 = por %p126, %p127
      %s129 = ssub.s32 %s25, %s37
      %s130 = ssub.s32 %s26, %s33
      %s131 = sor.u32 %s129, %s130
      %p132 = scmp.eq.s32.totalorder %s131, 0
      %s134 = sadd.s32 %s133, 1
      %s135 = scalar_select %p132, %s133, %s134
      %p138 = pneg %p132
      %p139 = scmp.eq.s32.totalorder %s18, 1
      %p140 = por %p138, %p139
      %p141 = scmp.ne.s32.totalorder %s133, %s136
      %p142 = scmp.eq.s32.totalorder %s18, 0
      %p143 = por %p141, %p142
      %p144 = scmp.ne.s32.totalorder %s133, %s136
      %p145 = scmp.eq.s32.totalorder %s23, 1
      %p146 = por %p144, %p145
      %p147 = scmp.ne.s32.totalorder %s136, %s137
      %p148 = scmp.eq.s32.totalorder %s23, 0
      %p149 = por %p147, %p148
      %p150 = scmp.ne.s32.totalorder %s136, %s137
      %p151 = scmp.eq.s32.totalorder %s24, 1
      %p152 = por %p150, %p151
      %p154 = scmp.ne.s32.totalorder %s137, %s153
      %p155 = scmp.eq.s32.totalorder %s24, 0
      %p156 = por %p154, %p155
      %p157 = scmp.le.s32.totalorder 1, %s18
      %p158 = scmp.lt.s32.totalorder %s18, 3
      %p159 = pnand %p157, %p158
      %p160 = pneg %p159
      // Predicated region
      $region9: #{tpu_custom_call.1} parent=5 // pred_check
        _
      $region10: #{tpu_custom_call.1} parent=5 // pred_check_branch
        %162 = sbr.rel (%p159) target = $region12
      $region11: #{tpu_custom_call.1} parent=5 // pred_region
        %s163 = ssub.s32 %s18, 1
        // Predicated region
        $region13: #{tpu_custom_call.1} parent=11 // pred_check
          %p164 = pneg %p51
        $region14: #{tpu_custom_call.1} parent=11 // pred_check_branch
          %166 = sbr.rel (%p164) target = $region16
        $region15: #{tpu_custom_call.1} parent=11 // pred_region
          %s168 = ssub.s32 16, 16
          %169 = vsyncadd [#allocation6], %s168
          %s171 = sshll.u32 %s0, 4
          %s172 = int_to_ptr.vmem [resolvable:$true] %s171
          %174 = dma.vmem_to_smem %s172, 16, [#allocation3], [#allocation6]
        $region16: #{tpu_custom_call.1} parent=11 // pred_fallthru
          _
        // Predicated region
        $region17: #{tpu_custom_call.1} parent=11 // pred_check
          %p175 = pneg %p72
        $region18: #{tpu_custom_call.1} parent=11 // pred_check_branch
          %177 = sbr.rel (%p175) target = $region20
        $region19: #{tpu_custom_call.1} parent=11 // pred_region
          _
        $region20: #{tpu_custom_call.1} parent=11 // pred_fallthru
          _
        // Predicated region
        $region21: #{tpu_custom_call.1} parent=11 // pred_check
          %p178 = pneg %p93
        $region22: #{tpu_custom_call.1} parent=11 // pred_check_branch
          %180 = sbr.rel (%p178) target = $region24
        $region23: #{tpu_custom_call.1} parent=11 // pred_region
          _
        $region24: #{tpu_custom_call.1} parent=11 // pred_fallthru
          _
      $region12: #{tpu_custom_call.1} parent=5 // pred_fallthru
        _
      %p181 = scmp.lt.s32.totalorder %s18, 2
      // Predicated region
      $region25: #{tpu_custom_call.1} parent=5 // pred_check
        %p182 = pneg %p181
      $region26: #{tpu_custom_call.1} parent=5 // pred_check_branch
        %184 = sbr.rel (%p182) target = $region28
      $region27: #{tpu_custom_call.1} parent=5 // pred_region
        // Predicated region
        $region29: #{tpu_custom_call.1} parent=27 // pred_check
          %p185 = pneg %p115
        $region30: #{tpu_custom_call.1} parent=27 // pred_check_branch
          %187 = sbr.rel (%p185) target = $region32
        $region31: #{tpu_custom_call.1} parent=27 // pred_region
          %s188 = sand.u32 %s105, 1
          %s189 = scalar_lea.sflag [#allocation4], %s188
          %s190 = sand.u32 %s105, 1
          %s191 = smul.addr %s190, 8
          %s192 = scalar_lea.vmem [#allocation7], %s191
          %s194 = ssub.s32 128, 128
          %195 = vsyncadd %s189, %s194
          %s196 = smul.addr %s25, 4
          %s197 = sadd.s32 %s26, %s196
          %s198 = smul.addr %s197, 32
          %s199 = scalar_lea.hbm %s3, %s198
          %s200 = sshll.u32 %s192, 4
          %s201 = int_to_ptr.vmem [resolvable:$true] %s200
          %206 = dma.hbm_to_vmem [thread:$0]  %s199, 128, %s201, %s189, 32, 32, 2
        $region32: #{tpu_custom_call.1} parent=27 // pred_fallthru
          _
      $region28: #{tpu_custom_call.1} parent=5 // pred_fallthru
        _
      %p207 = scmp.le.s32.totalorder 1, %s18
      %p208 = scmp.lt.s32.totalorder %s18, 3
      %p209 = pnand %p207, %p208
      %p210 = pneg %p209
      // Predicated region
      $region33: #{tpu_custom_call.1} parent=5 // pred_check
        _
      $region34: #{tpu_custom_call.1} parent=5 // pred_check_branch
        %212 = sbr.rel (%p209) target = $region36
      $region35: #{tpu_custom_call.1} parent=5 // pred_region
        %s213 = ssub.s32 %s18, 1
        // Predicated region
        $region37: #{tpu_custom_call.1} parent=35 // pred_check
          %p214 = pneg %p51
        $region38: #{tpu_custom_call.1} parent=35 // pred_check_branch
          %216 = sbr.rel (%p214) target = $region40
        $region39: #{tpu_custom_call.1} parent=35 // pred_region
          %217 = dma.done [#allocation6], 16
        $region40: #{tpu_custom_call.1} parent=35 // pred_fallthru
          _
        %s218 = sand.u32 %s108, 1
        %s219 = scalar_lea.sflag [#allocation4], %s218
        %s220 = sand.u32 %s108, 1
        %s221 = smul.addr %s220, 8
        %s222 = scalar_lea.vmem [#allocation7], %s221
        // Predicated region
        $region41: #{tpu_custom_call.1} parent=35 // pred_check
          %p223 = pneg %p121
        $region42: #{tpu_custom_call.1} parent=35 // pred_check_branch
          %225 = sbr.rel (%p223) target = $region44
        $region43: #{tpu_custom_call.1} parent=35 // pred_region
          %226 = dma.done %s219, 128
        $region44: #{tpu_custom_call.1} parent=35 // pred_fallthru
          _
        %227 = sfence
        %p228 = pneg %p51
        %p229 = pneg %p48
        %p230 = pneg %p72
        %p231 = pneg %p69
        %p232 = pneg %p93
        %p233 = pneg %p90
        %s234 = sand.u32 %s108, 1
        %s235 = scalar_lea.sflag [#allocation4], %s234
        %s236 = sand.u32 %s108, 1
        %s237 = smul.addr %s236, 8
        %s238 = scalar_lea.vmem [#allocation7], %s237
        %p239 = pneg %p121
        %p240 = pneg %p118
        %p241 = pneg %p149
        %p242 = pneg %p146
        %s243 = sand.u32 %s136, 1
        %s244 = scalar_lea.sflag [#allocation5], %s243
        %s245 = sand.u32 %s136, 1
        %s246 = smul.addr %s245, 8
        %s247 = scalar_lea.vmem [#allocation8], %s246
        %s248 = sld [smem:[#allocation3 + %s27]]
        %s249 = sld [smem:[#allocation2]]
        %s250 = smul.u32 %s248, 4
        %s251 = scalar_lea.vmem %s2, %s250
        %v252 = vld [vmem:[%s251] sm:$0xf]
        %v253 = vstv %s249
        %v254 = vmul.f32 %v252, %v253
        %v255 = vld [vmem:[%s222] sm:$0x3]
        %v256 = vld [vmem:[%s222 + $0x2] sm:$0x3]
        %v257 = vld [vmem:[%s222 + $0x4] sm:$0x3]
        %v258 = vld [vmem:[%s222 + $0x6] sm:$0x3]
        %v261 = vunpack.c.l.s4 1966171168
        %v262 = vunpack.c.0.s8 %v261
        %v263 = vlaneseq
        %v264 = vshrl.u32 %v263, 7
        %v265 = vsub.s32 %v262, %v264
        %v266 = vrot.slane %v254, %v265
        %v267 = vcombine.high %v266, %v266
        %v269 = vunpack.c.l.s4 1966171168
        %v270 = vunpack.c.0.s8 %v269
        %v271 = vlaneseq
        %v272 = vshrl.u32 %v271, 7
        %v273 = vsub.s32 %v270, %v272
        %v274 = vrot.slane %v266, %v273
        %v276 = vunpack.c.l.s4 1966171168
        %v277 = vunpack.c.0.s8 %v276
        %v278 = vlaneseq
        %v279 = vshrl.u32 %v278, 7
        %v280 = vsub.s32 %v277, %v279
        %v281 = vrot.slane %v267, %v280
        %v282 = vcombine.high %v274, %v274
        %v283 = vcombine.high %v281, %v281
        %v284 = vlaneseq
        %v285 = vshrl.u32 %v284, 7
        %v286 = vsub.s32 0, %v285
        %v287 = vrot.slane %v274, %v286
        %v288 = vlaneseq
        %v289 = vshrl.u32 %v288, 7
        %v290 = vsub.s32 0, %v289
        %v291 = vrot.slane %v281, %v290
        %v292 = vlaneseq
        %v293 = vshrl.u32 %v292, 7
        %v294 = vsub.s32 0, %v293
        %v295 = vrot.slane %v282, %v294
        %v296 = vlaneseq
        %v297 = vshrl.u32 %v296, 7
        %v298 = vsub.s32 0, %v297
        %v299 = vrot.slane %v283, %v298
        %v304 = vadd.f32 %v255, %v287
        %v305 = vadd.f32 %v256, %v291
        %v306 = vadd.f32 %v257, %v295
        %v307 = vadd.f32 %v258, %v299
        %308 = vst [vmem:[%s247] sm:$0x3] %v304
        %309 = vst [vmem:[%s247 + $0x2] sm:$0x3] %v305
        %310 = vst [vmem:[%s247 + $0x4] sm:$0x3] %v306
        %311 = vst [vmem:[%s247 + $0x6] sm:$0x3] %v307
        %s312 = sand.u32 %s136, 1
        %s313 = scalar_lea.sflag [#allocation5], %s312
        %s314 = sand.u32 %s136, 1
        %s315 = smul.addr %s314, 8
        %s316 = scalar_lea.vmem [#allocation8], %s315
        // Predicated region
        $region45: #{tpu_custom_call.1} parent=35 // pred_check
          %p317 = pneg %p146
        $region46: #{tpu_custom_call.1} parent=35 // pred_check_branch
          %319 = sbr.rel (%p317) target = $region48
        $region47: #{tpu_custom_call.1} parent=35 // pred_region
          %s321 = ssub.s32 128, 128
          %322 = vsyncadd %s313, %s321
          %s323 = smul.addr %s27, 4
          %s324 = sadd.s32 %s28, %s323
          %s325 = smul.addr %s324, 32
          %s326 = scalar_lea.hbm %s4, %s325
          %s327 = sshll.u32 %s316, 4
          %s328 = int_to_ptr.vmem [resolvable:$true] %s327
          %333 = dma.vmem_to_hbm [thread:$0]  %s328, 128, %s326, %s313, 32, 32, 2
        $region48: #{tpu_custom_call.1} parent=35 // pred_fallthru
          _
      $region36: #{tpu_custom_call.1} parent=5 // pred_fallthru
        _
      %p334 = scmp.le.s32.totalorder 2, %s18
      // Predicated region
      $region49: #{tpu_custom_call.1} parent=5 // pred_check
        %p335 = pneg %p334
      $region50: #{tpu_custom_call.1} parent=5 // pred_check_branch
        %337 = sbr.rel (%p335) target = $region52
      $region51: #{tpu_custom_call.1} parent=5 // pred_region
        %s338 = ssub.s32 %s18, 2
        // Predicated region
        $region53: #{tpu_custom_call.1} parent=51 // pred_check
          %p339 = pneg %p152
        $region54: #{tpu_custom_call.1} parent=51 // pred_check_branch
          %341 = sbr.rel (%p339) target = $region56
        $region55: #{tpu_custom_call.1} parent=51 // pred_region
          %s342 = sand.u32 %s137, 1
          %s343 = scalar_lea.sflag [#allocation5], %s342
          %s344 = sand.u32 %s137, 1
          %s345 = smul.addr %s344, 8
          %s346 = scalar_lea.vmem [#allocation8], %s345
          %347 = dma.done %s343, 128
        $region56: #{tpu_custom_call.1} parent=51 // pred_fallthru
          _
      $region52: #{tpu_custom_call.1} parent=5 // pred_fallthru
        _
    $region6: #{tpu_custom_call.1} parent=1 // loop_footer
      %s22 = sadd.s32 1, %s18
    $region7: #{tpu_custom_call.1} parent=1 // loop_footer_branch
      %17 = sbr.rel target = $region3
    $region8: #{tpu_custom_call.1} parent=1 // loop_exit
      _
    %348 = vsyncpa [#allocation4], 1
    %s349 = scalar_lea.sflag [#allocation4], 1
    %350 = vsyncpa %s349, 1
    %351 = vsyncpa [#allocation5], 1
    %s352 = scalar_lea.sflag [#allocation5], 1
    %353 = vsyncpa %s352, 1
    %354 = vsyncpa [#allocation6], 1
    %s355 = scalar_lea.sflag [#allocation6], 1
    %356 = vsyncpa %s355, 1

</llo_original>
